<compile_context>
chip_gen: v5e
topology: v5e:2x2
jax: 0.10.0
libtpu: 0.0.40
codegen_flags: <defaults>
</compile_context>

<pallas_src>
import jax
import jax.numpy as jnp
from jax.experimental import pallas as pl
from jax.experimental.pallas import tpu as pltpu

NEG_SLOPE = 0.3   # LeakyReLU negative_slope
POOL = 3          # MaxPool1d kernel/stride
EPS = 1e-5        # BatchNorm eps


def _leaky_relu(x):
    return jnp.where(x > 0, x, NEG_SLOPE * x)


def _conv1d_k3_im2col(h, w_packed, b, lmask, rmask):
    """h: (C, N) batch-fused activations, w_packed: (Cout, 3*C), b: (Cout, 1),
    lmask/rmask: (1, N) 0/1 masks zeroing the per-sequence boundary columns.
    Returns (Cout, N). One MXU matmul per conv (K = 3*C instead of 3 pushes of K=C)."""
    n = h.shape[1]
    h_left = pltpu.roll(h, 1, axis=1) * lmask          # h[:, c-1], 0 where l == 0
    h_right = pltpu.roll(h, n - 1, axis=1) * rmask     # h[:, c+1], 0 where l == L-1
    stacked = jnp.concatenate([h_left, h, h_right], axis=0)        # (3*C, N)
    return jnp.dot(w_packed, stacked, preferred_element_type=jnp.float32) + b


def resblock_kernel(x_ref, lmask_ref, rmask_ref,
                    bn1_s_ref, bn1_b_ref, w1_ref, b1_ref,
                    bn2_s_ref, bn2_b_ref, w2_ref, b2_ref,
                    wd_ref, bd_ref, fcw_ref, fcb_ref,
                    pool_sel_ref, seg_avg_ref, seg_bcast_ref,
                    out_ref):
    x = x_ref[0].astype(jnp.float32)                   # (Cin, N), N = TB*L
    n = x.shape[1]
    lmask = lmask_ref[...]                             # (1, N)
    rmask = rmask_ref[...]

    # --- bn_1 (eval, folded) + LeakyReLU ---
    h = _leaky_relu(x * bn1_s_ref[...] + bn1_b_ref[...])
    # --- conv_1 (k=3, pad=1) as a single matmul ---
    h = _conv1d_k3_im2col(h, w1_ref[...], b1_ref[...], lmask, rmask)   # (Cout, N)
    # --- bn_2 (eval, folded) + LeakyReLU ---
    h = _leaky_relu(h * bn2_s_ref[...] + bn2_b_ref[...])
    # --- conv_2 (k=3, pad=1) ---
    h = _conv1d_k3_im2col(h, w2_ref[...], b2_ref[...], lmask, rmask)   # (Cout, N)
    # --- residual via 1x1 (downsample) conv ---
    h = h + jnp.dot(wd_ref[...], x, preferred_element_type=jnp.float32) + bd_ref[...]

    # --- MaxPool1d(kernel=3, stride=3): window max via two rolled maxima, then
    #     compact the window-start columns with one 0/1 selection matmul. ---
    m3 = jnp.maximum(h, jnp.maximum(pltpu.roll(h, n - 1, axis=1),
                                    pltpu.roll(h, n - 2, axis=1)))
    p = jnp.dot(m3, pool_sel_ref[...], preferred_element_type=jnp.float32)  # (Cout, TB*Lp)

    # --- FMS: per-batch adaptive avg pool -> Linear -> sigmoid -> p*y + y ---
    m = jnp.dot(p, seg_avg_ref[...], preferred_element_type=jnp.float32)    # (Cout, TB)
    y = jax.nn.sigmoid(
        jnp.dot(fcw_ref[...], m, preferred_element_type=jnp.float32) + fcb_ref[...])
    y_full = jnp.dot(y, seg_bcast_ref[...], preferred_element_type=jnp.float32)  # (Cout, TB*Lp)

    out_ref[0] = ((p + 1.0) * y_full).astype(out_ref.dtype)   # p*y + y


def _pick_batch_tile(B, L, target_lanes=256):
    """Fuse enough batch elements per program to get a reasonably lane-dense N=TB*L."""
    tb = max(1, min(B, target_lanes // max(L, 1)))
    while B % tb:
        tb -= 1
    return tb


def res_block_forward(x, params, batch_tile=None):
    B, Cin, L = x.shape
    Cout = params["w1"].shape[0]
    Lp = L // POOL
    TB = batch_tile if batch_tile is not None else _pick_batch_tile(B, L)
    assert B % TB == 0
    G = B // TB
    N = TB * L
    Np = TB * Lp
    f32 = jnp.float32

    # Fold eval-mode BatchNorm into per-channel scale/bias (plain-JAX glue).
    s1 = params["bn1_gamma"] / jnp.sqrt(params["bn1_var"] + EPS)
    o1 = params["bn1_beta"] - params["bn1_mean"] * s1
    s2 = params["bn2_gamma"] / jnp.sqrt(params["bn2_var"] + EPS)
    o2 = params["bn2_beta"] - params["bn2_mean"] * s2

    # Pack conv weights lane-major for im2col: tap-k blocks along the K axis.
    w1 = params["w1"]
    w2 = params["w2"]
    w1p = jnp.concatenate([w1[:, :, 0], w1[:, :, 1], w1[:, :, 2]], axis=1).astype(f32)
    w2p = jnp.concatenate([w2[:, :, 0], w2[:, :, 1], w2[:, :, 2]], axis=1).astype(f32)

    # Residual path: 1x1 downsample conv, or identity when in_channels == out_channels.
    if "wd" in params:
        wd = params["wd"].astype(f32)
        bd = params["bd"].astype(f32)
    else:
        wd = jnp.eye(Cout, dtype=f32)
        bd = jnp.zeros((Cout,), f32)

    # Boundary masks for the k=3 lane rolls (zero padding, no cross-batch leakage).
    pos = jnp.arange(N) % L
    lmask = (pos != 0).astype(f32)[None, :]
    rmask = (pos != L - 1).astype(f32)[None, :]

    # MaxPool window-start selection matrix (N, Np): column b*Lp+j picks lane b*L+3j.
    starts = (jnp.arange(TB)[:, None] * L + POOL * jnp.arange(Lp)[None, :]).reshape(-1)
    pool_sel = jnp.zeros((N, Np), f32).at[starts, jnp.arange(Np)].set(1.0)

    # Per-batch-segment mean / broadcast matrices for the FMS block.
    seg_ids = jnp.repeat(jnp.arange(TB), Lp)
    seg_bcast = (jnp.arange(TB)[:, None] == seg_ids[None, :]).astype(f32)   # (TB, Np)
    seg_avg = seg_bcast.T / Lp                                               # (Np, TB)

    # Batch-fused activation layout: (G, Cin, TB*L) — last two block dims = full extents.
    x_t = x.astype(f32).reshape(G, TB, Cin, L).transpose(0, 2, 1, 3).reshape(G, Cin, N)

    def bcast(shape):
        return pl.BlockSpec(shape, lambda g, _s=len(shape): (0,) * _s)

    in_specs = [
        pl.BlockSpec((1, Cin, N), lambda g: (g, 0, 0)),   # x, TB batches per program
        bcast((1, N)), bcast((1, N)),                     # boundary masks
        bcast((Cin, 1)), bcast((Cin, 1)),                 # bn1 scale/bias
        bcast((Cout, 3 * Cin)), bcast((Cout, 1)),         # conv_1 packed w, b
        bcast((Cout, 1)), bcast((Cout, 1)),               # bn2 scale/bias
        bcast((Cout, 3 * Cout)), bcast((Cout, 1)),        # conv_2 packed w, b
        bcast((Cout, Cin)), bcast((Cout, 1)),             # downsample 1x1 w, b
        bcast((Cout, Cout)), bcast((Cout, 1)),            # fc_attention w, b
        bcast((N, Np)), bcast((Np, TB)), bcast((TB, Np)), # pool / segment matrices
    ]
    out_specs = pl.BlockSpec((1, Cout, Np), lambda g: (g, 0, 0))

    out_t = pl.pallas_call(
        resblock_kernel,
        out_shape=jax.ShapeDtypeStruct((G, Cout, Np), f32),
        grid=(G,),
        in_specs=in_specs,
        out_specs=out_specs,
        compiler_params=pltpu.CompilerParams(dimension_semantics=("parallel",)),
    )(x_t, lmask, rmask,
      s1[:, None].astype(f32), o1[:, None].astype(f32), w1p, params["b1"][:, None].astype(f32),
      s2[:, None].astype(f32), o2[:, None].astype(f32), w2p, params["b2"][:, None].astype(f32),
      wd, bd[:, None],
      params["fc_w"].astype(f32), params["fc_b"][:, None].astype(f32),
      pool_sel, seg_avg, seg_bcast)

    # Back to PyTorch's (B, Cout, Lp) layout.
    return out_t.reshape(G, Cout, TB, Lp).transpose(0, 2, 1, 3).reshape(B, Cout, Lp)


def ref_forward(x, params):
    """Pure-JAX reference mirroring the PyTorch forward (eval-mode BN)."""
    def bn(h, g, b, m, v):
        return (h - m[None, :, None]) / jnp.sqrt(v[None, :, None] + EPS) \
            * g[None, :, None] + b[None, :, None]

    def lrelu(h):
        return jnp.where(h > 0, h, NEG_SLOPE * h)

    def conv3(h, w, b):
        Bn, Cin, L = h.shape
        hp = jnp.pad(h, ((0, 0), (0, 0), (1, 1)))
        out = jnp.zeros((Bn, w.shape[0], L), jnp.float32)
        for k in range(3):
            out = out + jnp.einsum("oc,bcl->bol", w[:, :, k], hp[:, :, k:k + L])
        return out + b[None, :, None]

    h = lrelu(bn(x, params["bn1_gamma"], params["bn1_beta"],
                 params["bn1_mean"], params["bn1_var"]))
    h = conv3(h, params["w1"], params["b1"])
    h = lrelu(bn(h, params["bn2_gamma"], params["bn2_beta"],
                 params["bn2_mean"], params["bn2_var"]))
    h = conv3(h, params["w2"], params["b2"])
    res = jnp.einsum("oc,bcl->bol", params["wd"], x) + params["bd"][None, :, None]
    h = h + res
    B, C, L = h.shape
    Lp = L // POOL
    p = h[:, :, :Lp * POOL].reshape(B, C, Lp, POOL).max(axis=-1)
    m = p.mean(axis=-1)
    y = jax.nn.sigmoid(m @ params["fc_w"].T + params["fc_b"])[:, :, None]
    return p * y + y


if __name__ == "__main__":
    B, Cin, Cout, L = 2, 4, 8, 24
    key = jax.random.PRNGKey(0)
    ks = jax.random.split(key, 16)

    def init(k, shape, scale=0.2):
        return scale * jax.random.normal(k, shape, jnp.float32)

    params = dict(
        bn1_gamma=1.0 + init(ks[0], (Cin,), 0.1),
        bn1_beta=init(ks[1], (Cin,), 0.1),
        bn1_mean=init(ks[2], (Cin,), 0.1),
        bn1_var=1.0 + jnp.abs(init(ks[3], (Cin,), 0.1)),
        w1=init(ks[4], (Cout, Cin, 3)),
        b1=init(ks[5], (Cout,)),
        bn2_gamma=1.0 + init(ks[6], (Cout,), 0.1),
        bn2_beta=init(ks[7], (Cout,), 0.1),
        bn2_mean=init(ks[8], (Cout,), 0.1),
        bn2_var=1.0 + jnp.abs(init(ks[9], (Cout,), 0.1)),
        w2=init(ks[10], (Cout, Cout, 3)),
        b2=init(ks[11], (Cout,)),
        wd=init(ks[12], (Cout, Cin)),          # 1x1 downsample conv (kernel dim squeezed)
        bd=init(ks[13], (Cout,)),
        fc_w=init(ks[14], (Cout, Cout)),
        fc_b=init(ks[15], (Cout,)),
    )

    x = jax.random.normal(jax.random.PRNGKey(1), (B, Cin, L), jnp.float32)

    out = res_block_forward(x, params)
    out = jax.block_until_ready(out)

    ref = ref_forward(x, params)
    assert out.shape == (B, Cout, L // POOL), out.shape
    max_err = float(jnp.max(jnp.abs(out - ref)))
    assert max_err < 1e-3, f"mismatch vs reference: {max_err}"

    print("KERNEL_OK")
</pallas_src>

<mosaic_0001>
module attributes {stable_mosaic.version = 11 : i64} {
  func.func @resblock_kernel(%arg0: i32, %arg1: memref<1x4x48xf32, #tpu.memory_space<vmem>>, %arg2: memref<1x48xf32, #tpu.memory_space<vmem>>, %arg3: memref<1x48xf32, #tpu.memory_space<vmem>>, %arg4: memref<4x1xf32, #tpu.memory_space<vmem>>, %arg5: memref<4x1xf32, #tpu.memory_space<vmem>>, %arg6: memref<8x12xf32, #tpu.memory_space<vmem>>, %arg7: memref<8x1xf32, #tpu.memory_space<vmem>>, %arg8: memref<8x1xf32, #tpu.memory_space<vmem>>, %arg9: memref<8x1xf32, #tpu.memory_space<vmem>>, %arg10: memref<8x24xf32, #tpu.memory_space<vmem>>, %arg11: memref<8x1xf32, #tpu.memory_space<vmem>>, %arg12: memref<8x4xf32, #tpu.memory_space<vmem>>, %arg13: memref<8x1xf32, #tpu.memory_space<vmem>>, %arg14: memref<8x8xf32, #tpu.memory_space<vmem>>, %arg15: memref<8x1xf32, #tpu.memory_space<vmem>>, %arg16: memref<48x16xf32, #tpu.memory_space<vmem>>, %arg17: memref<16x2xf32, #tpu.memory_space<vmem>>, %arg18: memref<2x16xf32, #tpu.memory_space<vmem>>, %arg19: memref<1x8x16xf32, #tpu.memory_space<vmem>>) attributes {dimension_semantics = [#tpu.dimension_semantics<parallel>], iteration_bounds = array<i64: 1>, scalar_prefetch = 0 : i64, scratch_operands = 0 : i64, tpu.core_type = #tpu.core_type<tc>, window_params = [{transform_indices = @transform_0, window_bounds = array<i64: 1, 4, 48>}, {pipeline_mode = #tpu.pipeline_mode<synchronous>, transform_indices = @transform_1, window_bounds = array<i64: 1, 48>}, {pipeline_mode = #tpu.pipeline_mode<synchronous>, transform_indices = @transform_2, window_bounds = array<i64: 1, 48>}, {pipeline_mode = #tpu.pipeline_mode<synchronous>, transform_indices = @transform_3, window_bounds = array<i64: 4, 1>}, {pipeline_mode = #tpu.pipeline_mode<synchronous>, transform_indices = @transform_4, window_bounds = array<i64: 4, 1>}, {pipeline_mode = #tpu.pipeline_mode<synchronous>, transform_indices = @transform_5, window_bounds = array<i64: 8, 12>}, {pipeline_mode = #tpu.pipeline_mode<synchronous>, transform_indices = @transform_6, window_bounds = array<i64: 8, 1>}, {pipeline_mode = #tpu.pipeline_mode<synchronous>, transform_indices = @transform_7, window_bounds = array<i64: 8, 1>}, {pipeline_mode = #tpu.pipeline_mode<synchronous>, transform_indices = @transform_8, window_bounds = array<i64: 8, 1>}, {pipeline_mode = #tpu.pipeline_mode<synchronous>, transform_indices = @transform_9, window_bounds = array<i64: 8, 24>}, {pipeline_mode = #tpu.pipeline_mode<synchronous>, transform_indices = @transform_10, window_bounds = array<i64: 8, 1>}, {pipeline_mode = #tpu.pipeline_mode<synchronous>, transform_indices = @transform_11, window_bounds = array<i64: 8, 4>}, {pipeline_mode = #tpu.pipeline_mode<synchronous>, transform_indices = @transform_12, window_bounds = array<i64: 8, 1>}, {pipeline_mode = #tpu.pipeline_mode<synchronous>, transform_indices = @transform_13, window_bounds = array<i64: 8, 8>}, {pipeline_mode = #tpu.pipeline_mode<synchronous>, transform_indices = @transform_14, window_bounds = array<i64: 8, 1>}, {pipeline_mode = #tpu.pipeline_mode<synchronous>, transform_indices = @transform_15, window_bounds = array<i64: 48, 16>}, {pipeline_mode = #tpu.pipeline_mode<synchronous>, transform_indices = @transform_16, window_bounds = array<i64: 16, 2>}, {pipeline_mode = #tpu.pipeline_mode<synchronous>, transform_indices = @transform_17, window_bounds = array<i64: 2, 16>}, {transform_indices = @transform_18, window_bounds = array<i64: 1, 8, 16>}]} {
    %c0 = arith.constant 0 : index
    %c0_0 = arith.constant 0 : index
    %c0_1 = arith.constant 0 : index
    %0 = vector.load %arg1[%c0, %c0_0, %c0_1] : memref<1x4x48xf32, #tpu.memory_space<vmem>>, vector<1x4x48xf32>
    %1 = vector.shape_cast %0 : vector<1x4x48xf32> to vector<4x48xf32>
    %c0_2 = arith.constant 0 : index
    %c0_3 = arith.constant 0 : index
    %2 = vector.load %arg2[%c0_2, %c0_3] : memref<1x48xf32, #tpu.memory_space<vmem>>, vector<1x48xf32>
    %c0_4 = arith.constant 0 : index
    %c0_5 = arith.constant 0 : index
    %3 = vector.load %arg3[%c0_4, %c0_5] : memref<1x48xf32, #tpu.memory_space<vmem>>, vector<1x48xf32>
    %c0_6 = arith.constant 0 : index
    %c0_7 = arith.constant 0 : index
    %4 = vector.load %arg4[%c0_6, %c0_7] : memref<4x1xf32, #tpu.memory_space<vmem>>, vector<4x1xf32>
    %5 = vector.broadcast %4 : vector<4x1xf32> to vector<4x48xf32>
    %6 = arith.mulf %1, %5 : vector<4x48xf32>
    %c0_8 = arith.constant 0 : index
    %c0_9 = arith.constant 0 : index
    %7 = vector.load %arg5[%c0_8, %c0_9] : memref<4x1xf32, #tpu.memory_space<vmem>>, vector<4x1xf32>
    %8 = vector.broadcast %7 : vector<4x1xf32> to vector<4x48xf32>
    %9 = arith.addf %6, %8 : vector<4x48xf32>
    %cst = arith.constant 0.000000e+00 : f32
    %10 = vector.broadcast %cst : f32 to vector<4x48xf32>
    %11 = arith.cmpf ogt, %9, %10 : vector<4x48xf32>
    %cst_10 = arith.constant 3.000000e-01 : f32
    %12 = vector.broadcast %cst_10 : f32 to vector<4x48xf32>
    %13 = arith.mulf %12, %9 : vector<4x48xf32>
    %14 = arith.select %11, %9, %13 : vector<4x48xi1>, vector<4x48xf32>
    %c0_11 = arith.constant 0 : index
    %c0_12 = arith.constant 0 : index
    %15 = vector.load %arg6[%c0_11, %c0_12] : memref<8x12xf32, #tpu.memory_space<vmem>>, vector<8x12xf32>
    %c0_13 = arith.constant 0 : index
    %c0_14 = arith.constant 0 : index
    %16 = vector.load %arg7[%c0_13, %c0_14] : memref<8x1xf32, #tpu.memory_space<vmem>>, vector<8x1xf32>
    %c1_i32 = arith.constant 1 : i32
    %17 = tpu.dynamic_rotate %14 by %c1_i32 dim 1 : vector<4x48xf32>, i32 -> vector<4x48xf32>
    %18 = vector.broadcast %2 : vector<1x48xf32> to vector<4x48xf32>
    %19 = arith.mulf %17, %18 : vector<4x48xf32>
    %c47_i32 = arith.constant 47 : i32
    %20 = tpu.dynamic_rotate %14 by %c47_i32 dim 1 : vector<4x48xf32>, i32 -> vector<4x48xf32>
    %21 = vector.broadcast %3 : vector<1x48xf32> to vector<4x48xf32>
    %22 = arith.mulf %20, %21 : vector<4x48xf32>
    %23 = tpu.concatenate %19, %14, %22 in 0 : vector<4x48xf32>, vector<4x48xf32>, vector<4x48xf32> -> vector<12x48xf32>
    %cst_15 = arith.constant dense<0.000000e+00> : vector<8x48xf32>
    %24 = tpu.matmul %15, %23, %cst_15 {dimension_numbers = #tpu.dot_dimension_numbers<[1], [0], [0], [1], [0, 0, 1, 1], [], []>} : vector<8x12xf32>, vector<12x48xf32>, vector<8x48xf32> -> vector<8x48xf32>
    %25 = vector.broadcast %16 : vector<8x1xf32> to vector<8x48xf32>
    %26 = arith.addf %24, %25 : vector<8x48xf32>
    %c0_16 = arith.constant 0 : index
    %c0_17 = arith.constant 0 : index
    %27 = vector.load %arg8[%c0_16, %c0_17] : memref<8x1xf32, #tpu.memory_space<vmem>>, vector<8x1xf32>
    %28 = vector.broadcast %27 : vector<8x1xf32> to vector<8x48xf32>
    %29 = arith.mulf %26, %28 : vector<8x48xf32>
    %c0_18 = arith.constant 0 : index
    %c0_19 = arith.constant 0 : index
    %30 = vector.load %arg9[%c0_18, %c0_19] : memref<8x1xf32, #tpu.memory_space<vmem>>, vector<8x1xf32>
    %31 = vector.broadcast %30 : vector<8x1xf32> to vector<8x48xf32>
    %32 = arith.addf %29, %31 : vector<8x48xf32>
    %cst_20 = arith.constant 0.000000e+00 : f32
    %33 = vector.broadcast %cst_20 : f32 to vector<8x48xf32>
    %34 = arith.cmpf ogt, %32, %33 : vector<8x48xf32>
    %cst_21 = arith.constant 3.000000e-01 : f32
    %35 = vector.broadcast %cst_21 : f32 to vector<8x48xf32>
    %36 = arith.mulf %35, %32 : vector<8x48xf32>
    %37 = arith.select %34, %32, %36 : vector<8x48xi1>, vector<8x48xf32>
    %c0_22 = arith.constant 0 : index
    %c0_23 = arith.constant 0 : index
    %38 = vector.load %arg10[%c0_22, %c0_23] : memref<8x24xf32, #tpu.memory_space<vmem>>, vector<8x24xf32>
    %c0_24 = arith.constant 0 : index
    %c0_25 = arith.constant 0 : index
    %39 = vector.load %arg11[%c0_24, %c0_25] : memref<8x1xf32, #tpu.memory_space<vmem>>, vector<8x1xf32>
    %c1_i32_26 = arith.constant 1 : i32
    %40 = tpu.dynamic_rotate %37 by %c1_i32_26 dim 1 : vector<8x48xf32>, i32 -> vector<8x48xf32>
    %41 = vector.broadcast %2 : vector<1x48xf32> to vector<8x48xf32>
    %42 = arith.mulf %40, %41 : vector<8x48xf32>
    %c47_i32_27 = arith.constant 47 : i32
    %43 = tpu.dynamic_rotate %37 by %c47_i32_27 dim 1 : vector<8x48xf32>, i32 -> vector<8x48xf32>
    %44 = vector.broadcast %3 : vector<1x48xf32> to vector<8x48xf32>
    %45 = arith.mulf %43, %44 : vector<8x48xf32>
    %46 = tpu.concatenate %42, %37, %45 in 0 : vector<8x48xf32>, vector<8x48xf32>, vector<8x48xf32> -> vector<24x48xf32>
    %cst_28 = arith.constant dense<0.000000e+00> : vector<8x48xf32>
    %47 = tpu.matmul %38, %46, %cst_28 {dimension_numbers = #tpu.dot_dimension_numbers<[1], [0], [0], [1], [0, 0, 1, 1], [], []>} : vector<8x24xf32>, vector<24x48xf32>, vector<8x48xf32> -> vector<8x48xf32>
    %48 = vector.broadcast %39 : vector<8x1xf32> to vector<8x48xf32>
    %49 = arith.addf %47, %48 : vector<8x48xf32>
    %c0_29 = arith.constant 0 : index
    %c0_30 = arith.constant 0 : index
    %50 = vector.load %arg12[%c0_29, %c0_30] : memref<8x4xf32, #tpu.memory_space<vmem>>, vector<8x4xf32>
    %cst_31 = arith.constant dense<0.000000e+00> : vector<8x48xf32>
    %51 = tpu.matmul %50, %1, %cst_31 {dimension_numbers = #tpu.dot_dimension_numbers<[1], [0], [0], [1], [0, 0, 1, 1], [], []>} : vector<8x4xf32>, vector<4x48xf32>, vector<8x48xf32> -> vector<8x48xf32>
    %52 = arith.addf %49, %51 : vector<8x48xf32>
    %c0_32 = arith.constant 0 : index
    %c0_33 = arith.constant 0 : index
    %53 = vector.load %arg13[%c0_32, %c0_33] : memref<8x1xf32, #tpu.memory_space<vmem>>, vector<8x1xf32>
    %54 = vector.broadcast %53 : vector<8x1xf32> to vector<8x48xf32>
    %55 = arith.addf %52, %54 : vector<8x48xf32>
    %c47_i32_34 = arith.constant 47 : i32
    %56 = tpu.dynamic_rotate %55 by %c47_i32_34 dim 1 : vector<8x48xf32>, i32 -> vector<8x48xf32>
    %c46_i32 = arith.constant 46 : i32
    %57 = tpu.dynamic_rotate %55 by %c46_i32 dim 1 : vector<8x48xf32>, i32 -> vector<8x48xf32>
    %58 = arith.maximumf %56, %57 : vector<8x48xf32>
    %59 = arith.maximumf %55, %58 : vector<8x48xf32>
    %c0_35 = arith.constant 0 : index
    %c0_36 = arith.constant 0 : index
    %60 = vector.load %arg16[%c0_35, %c0_36] : memref<48x16xf32, #tpu.memory_space<vmem>>, vector<48x16xf32>
    %cst_37 = arith.constant dense<0.000000e+00> : vector<8x16xf32>
    %61 = tpu.matmul %59, %60, %cst_37 {dimension_numbers = #tpu.dot_dimension_numbers<[1], [0], [0], [1], [0, 0, 1, 1], [], []>} : vector<8x48xf32>, vector<48x16xf32>, vector<8x16xf32> -> vector<8x16xf32>
    %c0_38 = arith.constant 0 : index
    %c0_39 = arith.constant 0 : index
    %62 = vector.load %arg17[%c0_38, %c0_39] : memref<16x2xf32, #tpu.memory_space<vmem>>, vector<16x2xf32>
    %cst_40 = arith.constant dense<0.000000e+00> : vector<8x2xf32>
    %63 = tpu.matmul %61, %62, %cst_40 {dimension_numbers = #tpu.dot_dimension_numbers<[1], [0], [0], [1], [0, 0, 1, 1], [], []>} : vector<8x16xf32>, vector<16x2xf32>, vector<8x2xf32> -> vector<8x2xf32>
    %c0_41 = arith.constant 0 : index
    %c0_42 = arith.constant 0 : index
    %64 = vector.load %arg14[%c0_41, %c0_42] : memref<8x8xf32, #tpu.memory_space<vmem>>, vector<8x8xf32>
    %cst_43 = arith.constant dense<0.000000e+00> : vector<8x2xf32>
    %65 = tpu.matmul %64, %63, %cst_43 {dimension_numbers = #tpu.dot_dimension_numbers<[1], [0], [0], [1], [0, 0, 1, 1], [], []>} : vector<8x8xf32>, vector<8x2xf32>, vector<8x2xf32> -> vector<8x2xf32>
    %c0_44 = arith.constant 0 : index
    %c0_45 = arith.constant 0 : index
    %66 = vector.load %arg15[%c0_44, %c0_45] : memref<8x1xf32, #tpu.memory_space<vmem>>, vector<8x1xf32>
    %67 = vector.broadcast %66 : vector<8x1xf32> to vector<8x2xf32>
    %68 = arith.addf %65, %67 : vector<8x2xf32>
    %69 = arith.negf %68 : vector<8x2xf32>
    %70 = math.exp %69 : vector<8x2xf32>
    %cst_46 = arith.constant 1.000000e+00 : f32
    %71 = vector.broadcast %cst_46 : f32 to vector<8x2xf32>
    %72 = arith.addf %71, %70 : vector<8x2xf32>
    %73 = arith.divf %71, %72 : vector<8x2xf32>
    %c0_47 = arith.constant 0 : index
    %c0_48 = arith.constant 0 : index
    %74 = vector.load %arg18[%c0_47, %c0_48] : memref<2x16xf32, #tpu.memory_space<vmem>>, vector<2x16xf32>
    %cst_49 = arith.constant dense<0.000000e+00> : vector<8x16xf32>
    %75 = tpu.matmul %73, %74, %cst_49 {dimension_numbers = #tpu.dot_dimension_numbers<[1], [0], [0], [1], [0, 0, 1, 1], [], []>} : vector<8x2xf32>, vector<2x16xf32>, vector<8x16xf32> -> vector<8x16xf32>
    %cst_50 = arith.constant 1.000000e+00 : f32
    %76 = vector.broadcast %cst_50 : f32 to vector<8x16xf32>
    %77 = arith.addf %61, %76 : vector<8x16xf32>
    %78 = arith.mulf %77, %75 : vector<8x16xf32>
    %c0_51 = arith.constant 0 : index
    %c0_52 = arith.constant 0 : index
    %c0_53 = arith.constant 0 : index
    %79 = vector.load %arg19[%c0_51, %c0_52, %c0_53] : memref<1x8x16xf32, #tpu.memory_space<vmem>>, vector<1x8x16xf32>
    %80 = vector.shape_cast %79 : vector<1x8x16xf32> to vector<8x16xf32>
    %81 = vector.shape_cast %78 : vector<8x16xf32> to vector<1x8x16xf32>
    tpu.vector_store %arg19[%c0_51, %c0_52, %c0_53], %81 {strides = array<i32>} : memref<1x8x16xf32, #tpu.memory_space<vmem>>, vector<1x8x16xf32>,
    return
  }
  func.func @transform_0(%arg0: i32) -> (i32, i32, i32) {
    %c0_i32 = arith.constant 0 : i32
    %c0_i32_0 = arith.constant 0 : i32
    %c0_i32_1 = arith.constant 0 : i32
    return %arg0, %c0_i32, %c0_i32_0 : i32, i32, i32
  }
  func.func @transform_1(%arg0: i32) -> (i32, i32) {
    %c0_i32 = arith.constant 0 : i32
    %c0_i32_0 = arith.constant 0 : i32
    %c0_i32_1 = arith.constant 0 : i32
    return %c0_i32, %c0_i32_0 : i32, i32
  }
  func.func @transform_2(%arg0: i32) -> (i32, i32) {
    %c0_i32 = arith.constant 0 : i32
    %c0_i32_0 = arith.constant 0 : i32
    %c0_i32_1 = arith.constant 0 : i32
    return %c0_i32, %c0_i32_0 : i32, i32
  }
  func.func @transform_3(%arg0: i32) -> (i32, i32) {
    %c0_i32 = arith.constant 0 : i32
    %c0_i32_0 = arith.constant 0 : i32
    %c0_i32_1 = arith.constant 0 : i32
    return %c0_i32, %c0_i32_0 : i32, i32
  }
  func.func @transform_4(%arg0: i32) -> (i32, i32) {
    %c0_i32 = arith.constant 0 : i32
    %c0_i32_0 = arith.constant 0 : i32
    %c0_i32_1 = arith.constant 0 : i32
    return %c0_i32, %c0_i32_0 : i32, i32
  }
  func.func @transform_5(%arg0: i32) -> (i32, i32) {
    %c0_i32 = arith.constant 0 : i32
    %c0_i32_0 = arith.constant 0 : i32
    %c0_i32_1 = arith.constant 0 : i32
    return %c0_i32, %c0_i32_0 : i32, i32
  }
  func.func @transform_6(%arg0: i32) -> (i32, i32) {
    %c0_i32 = arith.constant 0 : i32
    %c0_i32_0 = arith.constant 0 : i32
    %c0_i32_1 = arith.constant 0 : i32
    return %c0_i32, %c0_i32_0 : i32, i32
  }
  func.func @transform_7(%arg0: i32) -> (i32, i32) {
    %c0_i32 = arith.constant 0 : i32
    %c0_i32_0 = arith.constant 0 : i32
    %c0_i32_1 = arith.constant 0 : i32
    return %c0_i32, %c0_i32_0 : i32, i32
  }
  func.func @transform_8(%arg0: i32) -> (i32, i32) {
    %c0_i32 = arith.constant 0 : i32
    %c0_i32_0 = arith.constant 0 : i32
    %c0_i32_1 = arith.constant 0 : i32
    return %c0_i32, %c0_i32_0 : i32, i32
  }
  func.func @transform_9(%arg0: i32) -> (i32, i32) {
    %c0_i32 = arith.constant 0 : i32
    %c0_i32_0 = arith.constant 0 : i32
    %c0_i32_1 = arith.constant 0 : i32
    return %c0_i32, %c0_i32_0 : i32, i32
  }
  func.func @transform_10(%arg0: i32) -> (i32, i32) {
    %c0_i32 = arith.constant 0 : i32
    %c0_i32_0 = arith.constant 0 : i32
    %c0_i32_1 = arith.constant 0 : i32
    return %c0_i32, %c0_i32_0 : i32, i32
  }
  func.func @transform_11(%arg0: i32) -> (i32, i32) {
    %c0_i32 = arith.constant 0 : i32
    %c0_i32_0 = arith.constant 0 : i32
    %c0_i32_1 = arith.constant 0 : i32
    return %c0_i32, %c0_i32_0 : i32, i32
  }
  func.func @transform_12(%arg0: i32) -> (i32, i32) {
    %c0_i32 = arith.constant 0 : i32
    %c0_i32_0 = arith.constant 0 : i32
    %c0_i32_1 = arith.constant 0 : i32
    return %c0_i32, %c0_i32_0 : i32, i32
  }
  func.func @transform_13(%arg0: i32) -> (i32, i32) {
    %c0_i32 = arith.constant 0 : i32
    %c0_i32_0 = arith.constant 0 : i32
    %c0_i32_1 = arith.constant 0 : i32
    return %c0_i32, %c0_i32_0 : i32, i32
  }
  func.func @transform_14(%arg0: i32) -> (i32, i32) {
    %c0_i32 = arith.constant 0 : i32
    %c0_i32_0 = arith.constant 0 : i32
    %c0_i32_1 = arith.constant 0 : i32
    return %c0_i32, %c0_i32_0 : i32, i32
  }
  func.func @transform_15(%arg0: i32) -> (i32, i32) {
    %c0_i32 = arith.constant 0 : i32
    %c0_i32_0 = arith.constant 0 : i32
    %c0_i32_1 = arith.constant 0 : i32
    return %c0_i32, %c0_i32_0 : i32, i32
  }
  func.func @transform_16(%arg0: i32) -> (i32, i32) {
    %c0_i32 = arith.constant 0 : i32
    %c0_i32_0 = arith.constant 0 : i32
    %c0_i32_1 = arith.constant 0 : i32
    return %c0_i32, %c0_i32_0 : i32, i32
  }
  func.func @transform_17(%arg0: i32) -> (i32, i32) {
    %c0_i32 = arith.constant 0 : i32
    %c0_i32_0 = arith.constant 0 : i32
    %c0_i32_1 = arith.constant 0 : i32
    return %c0_i32, %c0_i32_0 : i32, i32
  }
  func.func @transform_18(%arg0: i32) -> (i32, i32, i32) {
    %c0_i32 = arith.constant 0 : i32
    %c0_i32_0 = arith.constant 0 : i32
    %c0_i32_1 = arith.constant 0 : i32
    return %arg0, %c0_i32, %c0_i32_0 : i32, i32, i32
  }
}

</mosaic_0001>

<llo_original>
// kernel: tpu_custom_call.1
$region0: #{tpu_custom_call.1}
  #allocation0 [shape = 'u32[]', space=smem, size = 0x4, offset = 0x4, fixed_abs, tag = 'smem constant byte address 0x4 - core index']
  #allocation1 [shape = 'u32[72,128]{1,0:T(1,128)}', space=vmem, size = 0x9000, scoped, tag = 'internal scratch']
  %s0 = inlined_call_operand.vmem [shape: f32[1,4,48], index: 0, kind: input, shape index: {}]
  %s1 = inlined_call_operand.vmem [shape: f32[1,48], index: 1, kind: input, shape index: {}]
  %s2 = inlined_call_operand.vmem [shape: f32[1,48], index: 2, kind: input, shape index: {}]
  %s3 = inlined_call_operand.vmem [shape: f32[4,1], index: 3, kind: input, shape index: {}]
  %s4 = inlined_call_operand.vmem [shape: f32[4,1], index: 4, kind: input, shape index: {}]
  %s5 = inlined_call_operand.vmem [shape: f32[8,12], index: 5, kind: input, shape index: {}]
  %s6 = inlined_call_operand.vmem [shape: f32[8,1], index: 6, kind: input, shape index: {}]
  %s7 = inlined_call_operand.vmem [shape: f32[8,1], index: 7, kind: input, shape index: {}]
  %s8 = inlined_call_operand.vmem [shape: f32[8,1], index: 8, kind: input, shape index: {}]
  %s9 = inlined_call_operand.vmem [shape: f32[8,24], index: 9, kind: input, shape index: {}]
  %s10 = inlined_call_operand.vmem [shape: f32[8,1], index: 10, kind: input, shape index: {}]
  %s11 = inlined_call_operand.vmem [shape: f32[8,4], index: 11, kind: input, shape index: {}]
  %s12 = inlined_call_operand.vmem [shape: f32[8,1], index: 12, kind: input, shape index: {}]
  %s13 = inlined_call_operand.vmem [shape: f32[8,8], index: 13, kind: input, shape index: {}]
  %s14 = inlined_call_operand.vmem [shape: f32[8,1], index: 14, kind: input, shape index: {}]
  %s15 = inlined_call_operand.vmem [shape: f32[48,16], index: 15, kind: input, shape index: {}]
  %s16 = inlined_call_operand.vmem [shape: f32[16,2], index: 16, kind: input, shape index: {}]
  %s17 = inlined_call_operand.vmem [shape: f32[2,16], index: 17, kind: input, shape index: {}]
  %s18 = inlined_call_operand.hbm [shape: f32[1,8,16], index: 18, kind: output, shape index: {}]
  %s19 = sld [smem:[#allocation0]]
  $region82: #{tpu_custom_call.1} parent=0
    _
  %s21 = ssub.s32 1, %s19
  %s22 = scalar_select 0, %s21, %s19
  $region1: #{tpu_custom_call.1} parent=0
    #allocation2 [shape = 'u8[4096]{0}', space=vmem, size = 0x1000, scoped, tag = 'output window, operand 0, single buffered']
    #allocation3 [shape = 's32[1]{0}', space=sflag, size = 0x4, scoped, tag = 'scoped memory for tpu_custom_call.1']
    %23 = vsyncpa [#allocation3], 0
    // Predicated region
    $region2: #{tpu_custom_call.1} parent=1 // pred_check
      _
    $region3: #{tpu_custom_call.1} parent=1 // pred_check_branch
      %25 = sbr.rel (0) target = $region5
    $region4: #{tpu_custom_call.1} parent=1 // pred_region
      _
    $region5: #{tpu_custom_call.1} parent=1 // pred_fallthru
      _
    // Predicated region
    $region6: #{tpu_custom_call.1} parent=1 // pred_check
      _
    $region7: #{tpu_custom_call.1} parent=1 // pred_check_branch
      %27 = sbr.rel (0) target = $region9
    $region8: #{tpu_custom_call.1} parent=1 // pred_region
      _
    $region9: #{tpu_custom_call.1} parent=1 // pred_fallthru
      _
    // Predicated region
    $region10: #{tpu_custom_call.1} parent=1 // pred_check
      _
    $region11: #{tpu_custom_call.1} parent=1 // pred_check_branch
      %29 = sbr.rel (0) target = $region13
    $region12: #{tpu_custom_call.1} parent=1 // pred_region
      _
    $region13: #{tpu_custom_call.1} parent=1 // pred_fallthru
      _
    // Predicated region
    $region14: #{tpu_custom_call.1} parent=1 // pred_check
      _
    $region15: #{tpu_custom_call.1} parent=1 // pred_check_branch
      %31 = sbr.rel (0) target = $region17
    $region16: #{tpu_custom_call.1} parent=1 // pred_region
      _
    $region17: #{tpu_custom_call.1} parent=1 // pred_fallthru
      _
    // Predicated region
    $region18: #{tpu_custom_call.1} parent=1 // pred_check
      _
    $region19: #{tpu_custom_call.1} parent=1 // pred_check_branch
      %33 = sbr.rel (0) target = $region21
    $region20: #{tpu_custom_call.1} parent=1 // pred_region
      _
    $region21: #{tpu_custom_call.1} parent=1 // pred_fallthru
      _
    // Predicated region
    $region22: #{tpu_custom_call.1} parent=1 // pred_check
      _
    $region23: #{tpu_custom_call.1} parent=1 // pred_check_branch
      %35 = sbr.rel (0) target = $region25
    $region24: #{tpu_custom_call.1} parent=1 // pred_region
      _
    $region25: #{tpu_custom_call.1} parent=1 // pred_fallthru
      _
    // Predicated region
    $region26: #{tpu_custom_call.1} parent=1 // pred_check
      _
    $region27: #{tpu_custom_call.1} parent=1 // pred_check_branch
      %37 = sbr.rel (0) target = $region29
    $region28: #{tpu_custom_call.1} parent=1 // pred_region
      _
    $region29: #{tpu_custom_call.1} parent=1 // pred_fallthru
      _
    // Predicated region
    $region30: #{tpu_custom_call.1} parent=1 // pred_check
      _
    $region31: #{tpu_custom_call.1} parent=1 // pred_check_branch
      %39 = sbr.rel (0) target = $region33
    $region32: #{tpu_custom_call.1} parent=1 // pred_region
      _
    $region33: #{tpu_custom_call.1} parent=1 // pred_fallthru
      _
    // Predicated region
    $region34: #{tpu_custom_call.1} parent=1 // pred_check
      _
    $region35: #{tpu_custom_call.1} parent=1 // pred_check_branch
      %41 = sbr.rel (0) target = $region37
    $region36: #{tpu_custom_call.1} parent=1 // pred_region
      _
    $region37: #{tpu_custom_call.1} parent=1 // pred_fallthru
      _
    // Predicated region
    $region38: #{tpu_custom_call.1} parent=1 // pred_check
      _
    $region39: #{tpu_custom_call.1} parent=1 // pred_check_branch
      %43 = sbr.rel (0) target = $region41
    $region40: #{tpu_custom_call.1} parent=1 // pred_region
      _
    $region41: #{tpu_custom_call.1} parent=1 // pred_fallthru
      _
    // Predicated region
    $region42: #{tpu_custom_call.1} parent=1 // pred_check
      _
    $region43: #{tpu_custom_call.1} parent=1 // pred_check_branch
      %45 = sbr.rel (0) target = $region45
    $region44: #{tpu_custom_call.1} parent=1 // pred_region
      _
    $region45: #{tpu_custom_call.1} parent=1 // pred_fallthru
      _
    // Predicated region
    $region46: #{tpu_custom_call.1} parent=1 // pred_check
      _
    $region47: #{tpu_custom_call.1} parent=1 // pred_check_branch
      %47 = sbr.rel (0) target = $region49
    $region48: #{tpu_custom_call.1} parent=1 // pred_region
      _
    $region49: #{tpu_custom_call.1} parent=1 // pred_fallthru
      _
    // Predicated region
    $region50: #{tpu_custom_call.1} parent=1 // pred_check
      _
    $region51: #{tpu_custom_call.1} parent=1 // pred_check_branch
      %49 = sbr.rel (0) target = $region53
    $region52: #{tpu_custom_call.1} parent=1 // pred_region
      _
    $region53: #{tpu_custom_call.1} parent=1 // pred_fallthru
      _
    // Predicated region
    $region54: #{tpu_custom_call.1} parent=1 // pred_check
      _
    $region55: #{tpu_custom_call.1} parent=1 // pred_check_branch
      %51 = sbr.rel (0) target = $region57
    $region56: #{tpu_custom_call.1} parent=1 // pred_region
      _
    $region57: #{tpu_custom_call.1} parent=1 // pred_fallthru
      _
    // Predicated region
    $region58: #{tpu_custom_call.1} parent=1 // pred_check
      _
    $region59: #{tpu_custom_call.1} parent=1 // pred_check_branch
      %53 = sbr.rel (0) target = $region61
    $region60: #{tpu_custom_call.1} parent=1 // pred_region
      _
    $region61: #{tpu_custom_call.1} parent=1 // pred_fallthru
      _
    // Predicated region
    $region62: #{tpu_custom_call.1} parent=1 // pred_check
      _
    $region63: #{tpu_custom_call.1} parent=1 // pred_check_branch
      %55 = sbr.rel (0) target = $region65
    $region64: #{tpu_custom_call.1} parent=1 // pred_region
      _
    $region65: #{tpu_custom_call.1} parent=1 // pred_fallthru
      _
    // Predicated region
    $region66: #{tpu_custom_call.1} parent=1 // pred_check
      _
    $region67: #{tpu_custom_call.1} parent=1 // pred_check_branch
      %57 = sbr.rel (0) target = $region69
    $region68: #{tpu_custom_call.1} parent=1 // pred_region
      _
    $region69: #{tpu_custom_call.1} parent=1 // pred_fallthru
      _
    // Predicated region
    $region70: #{tpu_custom_call.1} parent=1 // pred_check
      _
    $region71: #{tpu_custom_call.1} parent=1 // pred_check_branch
      %59 = sbr.rel (0) target = $region73
    $region72: #{tpu_custom_call.1} parent=1 // pred_region
      _
    $region73: #{tpu_custom_call.1} parent=1 // pred_fallthru
      _
    %v60 = vld [vmem:[%s0] sm:$0xf]
    %v61 = vld [vmem:[%s1] sm:$0x1]
    %v62 = vld [vmem:[%s2] sm:$0x1]
    %v63 = vld [vmem:[%s3] sm:$0xf]
    %65 = vset.pattern.permute.xlu0 0
    %66 = vperm.xlu0 %65, %v63
    %v67 = vpop.permute.xlu0 %66
    %v69 = vmul.f32 %v60, %v67
    %v70 = vld [vmem:[%s4] sm:$0xf]
    %72 = vset.pattern.permute.xlu0 0
    %73 = vperm.xlu0 %72, %v70
    %v74 = vpop.permute.xlu0 %73
    %v76 = vadd.f32 %v69, %v74
    %vm77 = vcmp.gt.f32.partialorder %v76, 0.0
    %v78 = vmul.f32 %v76, 0.3
    %v79 = vsel %vm77, %v76, %v78
    %v80 = vld [vmem:[%s5] sm:$0xff]
    %v81 = vld [vmem:[%s6] sm:$0xff]
    %vm82 = vcmask 1047936
    %83 = vrot.lane.b32.xlu0 %v79, 48
    %v84 = vpop.permute.xlu0 %83
    %v85 = vsel %vm82, %v84, %v79
    %86 = vrot.lane.b32.xlu0 %v85, 48
    %v87 = vpop.permute.xlu0 %86
    %v88 = vsel %vm82, %v87, %v79
    %v90 = vperm.slane %v61, 0
    %91 = vrot.lane.b32.xlu0 %v90, 47
    %v92 = vpop.permute.xlu0 %91
    %v94 = vmul.f32 %v88, %v92
    %v96 = vperm.slane %v62, 0
    %97 = vrot.lane.b32.xlu0 %v96, 1
    %v98 = vpop.permute.xlu0 %97
    %v100 = vmul.f32 %v88, %v98
    %v102 = vrot.slane %v79, 4
    %103 = vrot.lane.b32.xlu0 %v102, 47
    %v104 = vpop.permute.xlu0 %103
    %107 = vrot.lane.b32.xlu0 %v100, 46
    %v108 = vpop.permute.xlu0 %107
    %vm109 = vcmask 1043456
    %v110 = vsel %vm109, %v94, %v104
    %112 = vset.pattern.permute.xlu0 0
    %113 = vperm.xlu0 %112, %v81
    %v114 = vpop.permute.xlu0 %113
    %117 = vrot.lane.b32.xlu0 %v110, 81
    %v118 = vpop.permute.xlu0 %117
    %119 = vrot.lane.b32.xlu0 %v108, 81
    %v120 = vpop.permute.xlu0 %119
    %vm122 = vcmask 97280
    %v124 = vsel %vm122, %v80, 0
    %v126 = vsel %vm109, %v120, 0
    %128 = vmatpush.msra.mxu0 0.0
    %129 = vmatpush.msra.mxu0 0.0
    %130 = vmatpush.msra.mxu0 0.0
    %131 = vmatpush.msra.mxu0 0.0
    %132 = vmatpush.msra.mxu0 0.0
    %133 = vmatpush.msra.mxu0 0.0
    %134 = vmatpush.msra.mxu0 0.0
    %135 = vmatpush.msra.mxu0 0.0
    %136 = vmatpush.msra.mxu0 0.0
    %137 = vmatpush.msra.mxu0 0.0
    %138 = vmatpush.msra.mxu0 0.0
    %139 = vmatpush.msra.mxu0 0.0
    %140 = vmatpush.msra.mxu0 0.0
    %141 = vmatpush.msra.mxu0 0.0
    %142 = vmatpush.msra.mxu0 %v126
    %143 = vmatpush.msra.mxu0 %v118
    %144 = vmatmul.f32.gmra.mxu0 %v124
    %v145 = vpop.f32.mrf.mxu0
    %v146 = vadd.f32 %v114, %v145
    %147 = vdwg.mxu0
    %v148 = vld [vmem:[%s7] sm:$0xff]
    %150 = vset.pattern.permute.xlu0 0
    %151 = vperm.xlu0 %150, %v148
    %v152 = vpop.permute.xlu0 %151
    %v154 = vmul.f32 %v146, %v152
    %v155 = vld [vmem:[%s8] sm:$0xff]
    %157 = vset.pattern.permute.xlu0 0
    %158 = vperm.xlu0 %157, %v155
    %v159 = vpop.permute.xlu0 %158
    %v161 = vadd.f32 %v154, %v159
    %vm162 = vcmp.gt.f32.partialorder %v161, 0.0
    %v163 = vmul.f32 %v161, 0.3
    %v164 = vsel %vm162, %v161, %v163
    %v165 = vld [vmem:[%s9] sm:$0xff]
    %v166 = vld [vmem:[%s10] sm:$0xff]
    %167 = vrot.lane.b32.xlu0 %v164, 48
    %v168 = vpop.permute.xlu0 %167
    %v169 = vsel %vm82, %v168, %v164
    %170 = vrot.lane.b32.xlu0 %v169, 48
    %v171 = vpop.permute.xlu0 %170
    %v172 = vsel %vm82, %v171, %v164
    %v173 = vmul.f32 %v172, %v92
    %v174 = vmul.f32 %v172, %v98
    %176 = vrot.lane.b32.xlu0 %v164, 47
    %v177 = vpop.permute.xlu0 %176
    %179 = vrot.lane.b32.xlu0 %v174, 46
    %v180 = vpop.permute.xlu0 %179
    %182 = vset.pattern.permute.xlu0 0
    %183 = vperm.xlu0 %182, %v166
    %v184 = vpop.permute.xlu0 %183
    %187 = vrot.lane.b32.xlu0 %v173, 81
    %v188 = vpop.permute.xlu0 %187
    %189 = vrot.lane.b32.xlu0 %v177, 81
    %v190 = vpop.permute.xlu0 %189
    %191 = vrot.lane.b32.xlu0 %v180, 81
    %v192 = vpop.permute.xlu0 %191
    %vm196 = vcmask 195584
    %v198 = vsel %vm196, %v165, 0
    %200 = vmatpush.msra.mxu0 0.0
    %201 = vmatpush.msra.mxu0 0.0
    %202 = vmatpush.msra.mxu0 0.0
    %203 = vmatpush.msra.mxu0 0.0
    %204 = vmatpush.msra.mxu0 0.0
    %205 = vmatpush.msra.mxu0 0.0
    %206 = vmatpush.msra.mxu0 0.0
    %207 = vmatpush.msra.mxu0 0.0
    %208 = vmatpush.msra.mxu0 0.0
    %209 = vmatpush.msra.mxu0 0.0
    %210 = vmatpush.msra.mxu0 0.0
    %211 = vmatpush.msra.mxu0 0.0
    %212 = vmatpush.msra.mxu0 0.0
    %213 = vmatpush.msra.mxu0 %v192
    %214 = vmatpush.msra.mxu0 %v190
    %215 = vmatpush.msra.mxu0 %v188
    %216 = vmatmul.f32.gmra.mxu0 %v198
    %v217 = vpop.f32.mrf.mxu0
    %v218 = vadd.f32 %v184, %v217
    %219 = vdwg.mxu0
    %v220 = vld [vmem:[%s11] sm:$0xff]
    %vm221 = vcmask 31744
    %v223 = vsel %vm221, %v220, 0
    %v226 = vsel %vm109, %v60, 0
    %228 = vmatpush.msra.mxu0 0.0
    %229 = vmatpush.msra.mxu0 0.0
    %230 = vmatpush.msra.mxu0 0.0
    %231 = vmatpush.msra.mxu0 0.0
    %232 = vmatpush.msra.mxu0 0.0
    %233 = vmatpush.msra.mxu0 0.0
    %234 = vmatpush.msra.mxu0 0.0
    %235 = vmatpush.msra.mxu0 0.0
    %236 = vmatpush.msra.mxu0 0.0
    %237 = vmatpush.msra.mxu0 0.0
    %238 = vmatpush.msra.mxu0 0.0
    %239 = vmatpush.msra.mxu0 0.0
    %240 = vmatpush.msra.mxu0 0.0
    %241 = vmatpush.msra.mxu0 0.0
    %242 = vmatpush.msra.mxu0 0.0
    %243 = vmatpush.msra.mxu0 %v226
    %244 = vmatmul.f32.gmra.mxu0 %v223
    %v245 = vpop.f32.mrf.mxu0
    %v246 = vadd.f32 0.0, %v245
    %247 = vdwg.mxu0
    %v248 = vadd.f32 %v218, %v246
    %v249 = vld [vmem:[%s12] sm:$0xff]
    %251 = vset.pattern.permute.xlu0 0
    %252 = vperm.xlu0 %251, %v249
    %v253 = vpop.permute.xlu0 %252
    %v255 = vadd.f32 %v248, %v253
    %256 = vrot.lane.b32.xlu0 %v255, 48
    %v257 = vpop.permute.xlu0 %256
    %v258 = vsel %vm82, %v257, %v255
    %259 = vrot.lane.b32.xlu0 %v258, 48
    %v260 = vpop.permute.xlu0 %259
    %v261 = vsel %vm82, %v260, %v255
    %263 = vrot.lane.b32.xlu0 %v261, 127
    %v264 = vpop.permute.xlu0 %263
    %v266 = vmax.f32 %v261, %v264
    %268 = vrot.lane.b32.xlu0 %v266, 127
    %v269 = vpop.permute.xlu0 %268
    %v271 = vmax.f32 %v255, %v269
    %v272 = vld [vmem:[%s15] sm:$0xff]
    %v273 = vld [vmem:[%s15 + $0x8] sm:$0xff]
    %v274 = vld [vmem:[%s15 + $0x10] sm:$0xff]
    %v275 = vld [vmem:[%s15 + $0x18] sm:$0xff]
    %v276 = vld [vmem:[%s15 + $0x20] sm:$0xff]
    %v277 = vld [vmem:[%s15 + $0x28] sm:$0xff]
    %vm278 = vcmask 392192
    %v280 = vsel %vm278, %v271, 0
    %282 = vmatpush.msra.mxu0 0.0
    %283 = vmatpush.msra.mxu0 0.0
    %284 = vmatpush.msra.mxu0 0.0
    %285 = vmatpush.msra.mxu0 0.0
    %286 = vmatpush.msra.mxu0 0.0
    %287 = vmatpush.msra.mxu0 0.0
    %288 = vmatpush.msra.mxu0 0.0
    %289 = vmatpush.msra.mxu0 0.0
    %290 = vmatpush.msra.mxu0 0.0
    %291 = vmatpush.msra.mxu0 0.0
    %292 = vmatpush.msra.mxu0 %v277
    %293 = vmatpush.msra.mxu0 %v276
    %294 = vmatpush.msra.mxu0 %v275
    %295 = vmatpush.msra.mxu0 %v274
    %296 = vmatpush.msra.mxu0 %v273
    %297 = vmatpush.msra.mxu0 %v272
    %298 = vmatmul.f32.gmra.mxu0 %v280
    %v299 = vpop.f32.mrf.mxu0
    %v300 = vadd.f32 0.0, %v299
    %301 = vdwg.mxu0
    %v302 = vld [vmem:[%s16] sm:$0xff]
    %v303 = vld [vmem:[%s16 + $0x8] sm:$0xff]
    %vm304 = vcmask 130048
    %v306 = vsel %vm304, %v300, 0
    %308 = vmatpush.msra.mxu0 0.0
    %309 = vmatpush.msra.mxu0 0.0
    %310 = vmatpush.msra.mxu0 0.0
    %311 = vmatpush.msra.mxu0 0.0
    %312 = vmatpush.msra.mxu0 0.0
    %313 = vmatpush.msra.mxu0 0.0
    %314 = vmatpush.msra.mxu0 0.0
    %315 = vmatpush.msra.mxu0 0.0
    %316 = vmatpush.msra.mxu0 0.0
    %317 = vmatpush.msra.mxu0 0.0
    %318 = vmatpush.msra.mxu0 0.0
    %319 = vmatpush.msra.mxu0 0.0
    %320 = vmatpush.msra.mxu0 0.0
    %321 = vmatpush.msra.mxu0 0.0
    %322 = vmatpush.msra.mxu0 %v303
    %323 = vmatpush.msra.mxu0 %v302
    %324 = vmatmul.f32.gmra.mxu0 %v306
    %v325 = vpop.f32.mrf.mxu0
    %v326 = vadd.f32 0.0, %v325
    %327 = vdwg.mxu0
    %v328 = vld [vmem:[%s13] sm:$0xff]
    %v329 = vld [vmem:[%s14] sm:$0xff]
    %331 = vset.pattern.permute.xlu0 0
    %332 = vperm.xlu0 %331, %v329
    %v333 = vpop.permute.xlu0 %332
    %vm335 = vcmask 64512
    %v337 = vsel %vm335, %v328, 0
    %339 = vmatpush.msra.mxu0 0.0
    %340 = vmatpush.msra.mxu0 0.0
    %341 = vmatpush.msra.mxu0 0.0
    %342 = vmatpush.msra.mxu0 0.0
    %343 = vmatpush.msra.mxu0 0.0
    %344 = vmatpush.msra.mxu0 0.0
    %345 = vmatpush.msra.mxu0 0.0
    %346 = vmatpush.msra.mxu0 0.0
    %347 = vmatpush.msra.mxu0 0.0
    %348 = vmatpush.msra.mxu0 0.0
    %349 = vmatpush.msra.mxu0 0.0
    %350 = vmatpush.msra.mxu0 0.0
    %351 = vmatpush.msra.mxu0 0.0
    %352 = vmatpush.msra.mxu0 0.0
    %353 = vmatpush.msra.mxu0 0.0
    %354 = vmatpush.msra.mxu0 %v326
    %355 = vmatmul.f32.gmra.mxu0 %v337
    %v356 = vpop.f32.mrf.mxu0
    %v357 = vadd.f32 %v333, %v356
    %358 = vdwg.mxu0
    %v359 = vxor.u32 %v357, 2147483648
    %v360 = vmul.f32 %v359, 1.442695
    %v361 = vpow.pop %v360
    %v362 = vadd.f32 %v361, 1.0
    %v363 = vrcp.pop %v362
    %v364 = vmul.f32 %v362, %v363
    %v365 = vsub.f32 1.0, %v364
    %v366 = vmul.f32 %v363, %v365
    %v367 = vadd.f32 %v363, %v366
    %vm368 = vweird.f32 %v362
    %vm369 = vweird.f32 %v363
    %vm370 = vmor %vm368, %vm369
    %v371 = vsel %vm370, %v363, %v367
    %v372 = vand.u32 2147483647, %v362
    %vm373 = vcmp.eq.f32.partialorder %v372, 8.507059e+37
    %v374 = vand.u32 %v362, 2147483648
    %v375 = vor.u32 1.1754944e-38, %v374
    %v376 = vsel %vm373, %v375, %v371
    %v377 = vmul.f32 1.0, %v376
    %v378 = vld [vmem:[%s17] sm:$0x3]
    %vm379 = vcmask 15360
    %v381 = vsel %vm379, %v377, 0
    %vm383 = vcmask 1041408
    %v385 = vsel %vm383, %v378, 0
    %387 = vmatpush.msra.mxu0 0.0
    %388 = vmatpush.msra.mxu0 0.0
    %389 = vmatpush.msra.mxu0 0.0
    %390 = vmatpush.msra.mxu0 0.0
    %391 = vmatpush.msra.mxu0 0.0
    %392 = vmatpush.msra.mxu0 0.0
    %393 = vmatpush.msra.mxu0 0.0
    %394 = vmatpush.msra.mxu0 0.0
    %395 = vmatpush.msra.mxu0 0.0
    %396 = vmatpush.msra.mxu0 0.0
    %397 = vmatpush.msra.mxu0 0.0
    %398 = vmatpush.msra.mxu0 0.0
    %399 = vmatpush.msra.mxu0 0.0
    %400 = vmatpush.msra.mxu0 0.0
    %401 = vmatpush.msra.mxu0 0.0
    %402 = vmatpush.msra.mxu0 %v385
    %403 = vmatmul.f32.gmra.mxu0 %v381
    %v404 = vpop.f32.mrf.mxu0
    %v405 = vadd.f32 0.0, %v404
    %406 = vdwg.mxu0
    %v407 = vadd.f32 %v300, 1.0
    %v408 = vmul.f32 %v407, %v405
    %409 = vst.msk [vmem:[#allocation2] sm:$0xff] %vm304, %v408
    // Predicated region
    $region74: #{tpu_custom_call.1} parent=1 // pred_check
      _
    $region75: #{tpu_custom_call.1} parent=1 // pred_check_branch
      %411 = sbr.rel (0) target = $region77
    $region76: #{tpu_custom_call.1} parent=1 // pred_region
      %413 = vsyncadd [#allocation3], 0
      %s415 = sshll.u32 [#allocation2], 4
      %s416 = int_to_ptr.vmem [resolvable:$true] %s415
      %s417 = sshll.u32 %s18, 4
      %s418 = int_to_ptr.hbm [resolvable:$true] %s417
      %420 = dma.vmem_to_hbm [thread:$0]  %s416, 128, %s418, [#allocation3]
    $region77: #{tpu_custom_call.1} parent=1 // pred_fallthru
      _
    // Predicated region
    $region78: #{tpu_custom_call.1} parent=1 // pred_check
      _
    $region79: #{tpu_custom_call.1} parent=1 // pred_check_branch
      %422 = sbr.rel (0) target = $region81
    $region80: #{tpu_custom_call.1} parent=1 // pred_region
      %424 = dma.done [#allocation3], 128
    $region81: #{tpu_custom_call.1} parent=1 // pred_fallthru
      _
    %425 = vsyncpa [#allocation3], 1

</llo_original>
